<compile_context>
chip_gen: v6e
topology: v6e:2x2x1
jax: 0.10.0
libtpu: 0.0.40
codegen_flags: <defaults>
</compile_context>

<pallas_src>
import numpy as np
import jax
import jax.numpy as jnp
from jax.experimental import pallas as pl
from jax.experimental.pallas import tpu as pltpu

EPS = 1e-5


# ---------------------------------------------------------------------------
# Pallas kernel (one batch element per grid step, everything small in VMEM).
# ---------------------------------------------------------------------------
def make_sppm_kernel(l_true):
    """l_true = real (unpadded) sequence length, needed for the conv3 edge mask."""

    def kernel(x_ref, p1_ref, p2_ref, p4_ref,
               w1_ref, w2_ref, w3_ref,
               shifts_ref, ucat_ref, wcat_ref,
               out_ref):
        f32 = jnp.float32
        x = x_ref[...]                         # (Cin_p, L_p), compute dtype
        cdt = x.dtype

        def branch(p_ref, w_ref, idx):
            # adaptive avg pool (tiny (L_p,k) operator) -> 1x1 conv (BN scale
            # already folded into w) -> +shift -> ReLU
            pooled = jnp.dot(x, p_ref[...], preferred_element_type=f32)        # (Cin_p, k)
            y = jnp.dot(w_ref[...], pooled.astype(cdt),
                        preferred_element_type=f32)                            # (Cout_p, k)
            return jnp.maximum(y + shifts_ref[idx], 0.0)

        # All three upsamples fused into one matmul: [y1|y2|y4] @ [U1;U2;U4]
        ycat = jnp.concatenate(
            [branch(p1_ref, w1_ref, 0),
             branch(p2_ref, w2_ref, 1),
             branch(p4_ref, w3_ref, 2)], axis=1)                               # (Cout_p, 7)
        fusion = jnp.dot(ycat.astype(cdt), ucat_ref[...],
                         preferred_element_type=f32)                           # (Cout_p, L_p)

        # conv_out: kernel_size=3, padding=1 via lane rolls + edge masks
        # (per-batch tiling => tile edges are exactly the zero-padding points).
        l_pad = fusion.shape[-1]
        lane = jax.lax.broadcasted_iota(jnp.int32, fusion.shape, 1)
        f_prev = jnp.where(lane == 0, 0.0, pltpu.roll(fusion, 1, axis=1))      # f[l-1]
        f_next = jnp.where(lane == l_true - 1, 0.0,
                           pltpu.roll(fusion, l_pad - 1, axis=1))              # f[l+1]

        # All three taps in a single MXU matmul (contraction dim 3*Cout_p).
        fcat = jnp.concatenate([f_prev, fusion, f_next], axis=0).astype(cdt)   # (3*Cout_p, L_p)
        out = jnp.dot(wcat_ref[...], fcat, preferred_element_type=f32)         # (Cout_p, L_p)
        out_ref[...] = jnp.maximum(out + shifts_ref[3], 0.0)

    return kernel


# ---------------------------------------------------------------------------
# Host-side static operator construction (tiny, per-length -- no block diag).
# ---------------------------------------------------------------------------
def adaptive_pool_matrix(L, L_pad, k):
    """P (L_pad, k): x(:, :L) @ P[:L] == AdaptiveAvgPool1d(k)(x)."""
    P = np.zeros((L_pad, k), np.float32)
    for i in range(k):
        s = (i * L) // k
        e = -(-((i + 1) * L) // k)          # ceil
        P[s:e, i] = 1.0 / (e - s)
    return P


def linear_upsample_matrix(k, L, L_pad):
    """U (k, L_pad): y @ U == F.interpolate(y, L, mode='linear', align_corners=False),
    zero columns past L."""
    U = np.zeros((k, L_pad), np.float32)
    scale = k / L
    for j in range(L):
        real = max(scale * (j + 0.5) - 0.5, 0.0)
        i0 = min(int(np.floor(real)), k - 1)
        i1 = min(i0 + 1, k - 1)
        lam = real - i0
        U[i0, j] += 1.0 - lam
        U[i1, j] += lam
    return U


def fold_bn(gamma, beta, mean, var):
    scale = gamma / np.sqrt(var + EPS)
    shift = beta - mean * scale
    return scale.astype(np.float32), shift.astype(np.float32)


def _round_up(v, m):
    return (v + m - 1) // m * m


# ---------------------------------------------------------------------------
# Wrapper
# ---------------------------------------------------------------------------
def sppm_forward(x, params, compute_dtype=jnp.bfloat16):
    x = jnp.asarray(x, jnp.float32)
    N, Cin, L = x.shape
    Cout = params["w1"].shape[0]

    Cin_p = _round_up(Cin, 8)        # sublane alignment
    Cout_p = _round_up(Cout, 8)
    L_p = _round_up(L, 128)          # lane-dense tiles / stores

    # Streamed input tile: (N, Cin_p, L_p) in compute dtype (zero padded).
    x_p = jnp.pad(x, ((0, 0), (0, Cin_p - Cin), (0, L_p - L))).astype(compute_dtype)

    # Tiny resident operators.
    P1 = jnp.asarray(adaptive_pool_matrix(L, L_p, 1), compute_dtype)
    P2 = jnp.asarray(adaptive_pool_matrix(L, L_p, 2), compute_dtype)
    P4 = jnp.asarray(adaptive_pool_matrix(L, L_p, 4), compute_dtype)
    Ucat = jnp.asarray(
        np.concatenate([linear_upsample_matrix(k, L, L_p) for k in (1, 2, 4)], axis=0),
        compute_dtype)                                                       # (7, L_p)

    # Fold BN (eval) scale into the conv weights; keep per-channel shift.
    s1, b1 = fold_bn(*params["bn1"])
    s2, b2 = fold_bn(*params["bn2"])
    s3, b3 = fold_bn(*params["bn3"])
    so, bo = fold_bn(*params["bn_out"])

    def pad_w(w_scaled):                             # (Cout, Cin) -> (Cout_p, Cin_p)
        wp = np.zeros((Cout_p, Cin_p), np.float32)
        wp[:Cout, :Cin] = w_scaled
        return jnp.asarray(wp, compute_dtype)

    w1 = pad_w(s1[:, None] * np.asarray(params["w1"], np.float32))
    w2 = pad_w(s2[:, None] * np.asarray(params["w2"], np.float32))
    w3 = pad_w(s3[:, None] * np.asarray(params["w3"], np.float32))

    # Fused 3-tap output conv weight: out = Wcat @ [f_prev; f; f_next].
    wcat_np = np.zeros((Cout_p, 3 * Cout_p), np.float32)
    wout = np.asarray(params["wout"], np.float32)    # (Cout, Cout, 3): taps -> l-1, l, l+1
    for j in range(3):
        wcat_np[:Cout, j * Cout_p:j * Cout_p + Cout] = so[:, None] * wout[:, :, j]
    wcat = jnp.asarray(wcat_np, compute_dtype)

    shifts_np = np.zeros((4, Cout_p, 1), np.float32)
    for i, b in enumerate((b1, b2, b3, bo)):
        shifts_np[i, :Cout, 0] = b
    shifts = jnp.asarray(shifts_np)                  # f32 (applied post-accumulation)

    def resident(shape):
        zeros = (0,) * len(shape)
        return pl.BlockSpec(shape, lambda n: zeros)

    in_specs = [
        pl.BlockSpec((None, Cin_p, L_p), lambda n: (n, 0, 0)),   # x: one batch per step
        resident((L_p, 1)), resident((L_p, 2)), resident((L_p, 4)),
        resident((Cout_p, Cin_p)), resident((Cout_p, Cin_p)), resident((Cout_p, Cin_p)),
        resident((4, Cout_p, 1)),
        resident((7, L_p)),
        resident((Cout_p, 3 * Cout_p)),
    ]
    out_spec = pl.BlockSpec((None, Cout_p, L_p), lambda n: (n, 0, 0))

    flops_per_n = 2 * (Cin_p * L_p * 7 + Cout_p * Cin_p * 7
                       + Cout_p * 7 * L_p + Cout_p * 3 * Cout_p * L_p)
    weight_arrays = (P1, P2, P4, w1, w2, w3, shifts, Ucat, wcat)
    bytes_acc = int(x_p.size * x_p.dtype.itemsize
                    + N * Cout_p * L_p * 4
                    + sum(a.size * a.dtype.itemsize for a in weight_arrays))

    out_p = pl.pallas_call(
        make_sppm_kernel(L),
        out_shape=jax.ShapeDtypeStruct((N, Cout_p, L_p), jnp.float32),
        grid=(N,),
        in_specs=in_specs,
        out_specs=out_spec,
        compiler_params=pltpu.CompilerParams(dimension_semantics=("parallel",)),
        cost_estimate=pl.CostEstimate(flops=N * flops_per_n,
                                      transcendentals=0,
                                      bytes_accessed=bytes_acc),
    )(x_p, P1, P2, P4, w1, w2, w3, shifts, Ucat, wcat)

    return out_p[:, :Cout, :L]                       # strip channel / length padding


# ---------------------------------------------------------------------------
# Pure-numpy reference (mirrors the PyTorch module, eval-mode BN)
# ---------------------------------------------------------------------------
def reference_forward(x, params):
    x = np.asarray(x, np.float64)
    N, Cin, L = x.shape

    def adaptive_pool(v, k):
        out = np.zeros((N, v.shape[1], k))
        for i in range(k):
            s = (i * L) // k
            e = -(-((i + 1) * L) // k)
            out[:, :, i] = v[:, :, s:e].mean(-1)
        return out

    def bn_relu(y, bn):
        g, b, m, v = bn
        y = (y - m[None, :, None]) / np.sqrt(v[None, :, None] + EPS) * g[None, :, None] \
            + b[None, :, None]
        return np.maximum(y, 0.0)

    def upsample(y):
        k = y.shape[-1]
        scale = k / L
        j = np.arange(L)
        real = np.maximum(scale * (j + 0.5) - 0.5, 0.0)
        i0 = np.minimum(np.floor(real).astype(np.int64), k - 1)
        i1 = np.minimum(i0 + 1, k - 1)
        lam = real - i0
        return y[:, :, i0] * (1.0 - lam) + y[:, :, i1] * lam

    def branch(k, w, bn):
        y = adaptive_pool(x, k)
        y = np.einsum('oc,nck->nok', w, y)
        return upsample(bn_relu(y, bn))

    fusion = (branch(1, params["w1"], params["bn1"])
              + branch(2, params["w2"], params["bn2"])
              + branch(4, params["w3"], params["bn3"]))
    fp = np.pad(fusion, ((0, 0), (0, 0), (1, 1)))
    out = sum(np.einsum('oc,ncl->nol', params["wout"][:, :, j], fp[:, :, j:j + L])
              for j in range(3))
    return bn_relu(out, params["bn_out"])


# ---------------------------------------------------------------------------
if __name__ == "__main__":
    N, Cin, Cout, L = 2, 4, 8, 16

    key = jax.random.PRNGKey(0)
    kx, k1, k2, k3, k4 = jax.random.split(key, 5)

    x = jax.random.normal(kx, (N, Cin, L), jnp.float32)

    def bn_params(c, seed):
        r = np.random.RandomState(seed)
        gamma = (1.0 + 0.1 * r.randn(c)).astype(np.float32)
        beta = (0.1 * r.randn(c)).astype(np.float32)
        mean = (0.1 * r.randn(c)).astype(np.float32)
        var = (1.0 + 0.1 * np.abs(r.randn(c))).astype(np.float32)
        return gamma, beta, mean, var

    params = {
        "w1": np.asarray(0.2 * jax.random.normal(k1, (Cout, Cin)), np.float32),
        "w2": np.asarray(0.2 * jax.random.normal(k2, (Cout, Cin)), np.float32),
        "w3": np.asarray(0.2 * jax.random.normal(k3, (Cout, Cin)), np.float32),
        "wout": np.asarray(0.2 * jax.random.normal(k4, (Cout, Cout, 3)), np.float32),
        "bn1": bn_params(Cout, 1),
        "bn2": bn_params(Cout, 2),
        "bn3": bn_params(Cout, 3),
        "bn_out": bn_params(Cout, 4),
    }

    ref = reference_forward(np.asarray(x), params)

    # Exact-structure check in f32 (tight tolerance).
    out_f32 = jax.block_until_ready(sppm_forward(x, params, compute_dtype=jnp.float32))
    np.testing.assert_allclose(np.asarray(out_f32), ref, rtol=1e-4, atol=1e-4)

    # Default bf16 compute path (f32 accumulation) with an appropriate tolerance.
    out_bf16 = jax.block_until_ready(sppm_forward(x, params))
    np.testing.assert_allclose(np.asarray(out_bf16), ref, rtol=5e-2, atol=5e-2)

    print("KERNEL_OK")
</pallas_src>

<mosaic_0001>
module attributes {stable_mosaic.version = 11 : i64} {
  func.func @kernel(%arg0: i32, %arg1: memref<1x8x128xf32, #tpu.memory_space<vmem>>, %arg2: memref<128x1xf32, #tpu.memory_space<vmem>>, %arg3: memref<128x2xf32, #tpu.memory_space<vmem>>, %arg4: memref<128x4xf32, #tpu.memory_space<vmem>>, %arg5: memref<8x8xf32, #tpu.memory_space<vmem>>, %arg6: memref<8x8xf32, #tpu.memory_space<vmem>>, %arg7: memref<8x8xf32, #tpu.memory_space<vmem>>, %arg8: memref<4x8x1xf32, #tpu.memory_space<vmem>>, %arg9: memref<7x128xf32, #tpu.memory_space<vmem>>, %arg10: memref<8x24xf32, #tpu.memory_space<vmem>>, %arg11: memref<1x8x128xf32, #tpu.memory_space<vmem>>) attributes {dimension_semantics = [#tpu.dimension_semantics<parallel>], iteration_bounds = array<i64: 2>, scalar_prefetch = 0 : i64, scratch_operands = 0 : i64, tpu.core_type = #tpu.core_type<tc>, window_params = [{transform_indices = @transform_0, window_bounds = array<i64: 1, 8, 128>}, {pipeline_mode = #tpu.pipeline_mode<synchronous>, transform_indices = @transform_1, window_bounds = array<i64: 128, 1>}, {pipeline_mode = #tpu.pipeline_mode<synchronous>, transform_indices = @transform_2, window_bounds = array<i64: 128, 2>}, {pipeline_mode = #tpu.pipeline_mode<synchronous>, transform_indices = @transform_3, window_bounds = array<i64: 128, 4>}, {pipeline_mode = #tpu.pipeline_mode<synchronous>, transform_indices = @transform_4, window_bounds = array<i64: 8, 8>}, {pipeline_mode = #tpu.pipeline_mode<synchronous>, transform_indices = @transform_5, window_bounds = array<i64: 8, 8>}, {pipeline_mode = #tpu.pipeline_mode<synchronous>, transform_indices = @transform_6, window_bounds = array<i64: 8, 8>}, {pipeline_mode = #tpu.pipeline_mode<synchronous>, transform_indices = @transform_7, window_bounds = array<i64: 4, 8, 1>}, {pipeline_mode = #tpu.pipeline_mode<synchronous>, transform_indices = @transform_8, window_bounds = array<i64: 7, 128>}, {pipeline_mode = #tpu.pipeline_mode<synchronous>, transform_indices = @transform_9, window_bounds = array<i64: 8, 24>}, {transform_indices = @transform_10, window_bounds = array<i64: 1, 8, 128>}]} {
    %c0 = arith.constant 0 : index
    %c0_0 = arith.constant 0 : index
    %c0_1 = arith.constant 0 : index
    %0 = vector.load %arg1[%c0, %c0_0, %c0_1] : memref<1x8x128xf32, #tpu.memory_space<vmem>>, vector<1x8x128xf32>
    %1 = vector.shape_cast %0 : vector<1x8x128xf32> to vector<8x128xf32>
    %c0_2 = arith.constant 0 : index
    %c0_3 = arith.constant 0 : index
    %2 = vector.load %arg2[%c0_2, %c0_3] : memref<128x1xf32, #tpu.memory_space<vmem>>, vector<128x1xf32>
    %cst = arith.constant dense<0.000000e+00> : vector<8x1xf32>
    %3 = tpu.matmul %1, %2, %cst {dimension_numbers = #tpu.dot_dimension_numbers<[1], [0], [0], [1], [0, 0, 1, 1], [], []>} : vector<8x128xf32>, vector<128x1xf32>, vector<8x1xf32> -> vector<8x1xf32>
    %c0_4 = arith.constant 0 : index
    %c0_5 = arith.constant 0 : index
    %4 = vector.load %arg5[%c0_4, %c0_5] : memref<8x8xf32, #tpu.memory_space<vmem>>, vector<8x8xf32>
    %cst_6 = arith.constant dense<0.000000e+00> : vector<8x1xf32>
    %5 = tpu.matmul %4, %3, %cst_6 {dimension_numbers = #tpu.dot_dimension_numbers<[1], [0], [0], [1], [0, 0, 1, 1], [], []>} : vector<8x8xf32>, vector<8x1xf32>, vector<8x1xf32> -> vector<8x1xf32>
    %c0_7 = arith.constant 0 : index
    %c0_8 = arith.constant 0 : index
    %c0_9 = arith.constant 0 : index
    %6 = vector.load %arg8[%c0_7, %c0_8, %c0_9] : memref<4x8x1xf32, #tpu.memory_space<vmem>>, vector<1x8x1xf32>
    %7 = vector.shape_cast %6 : vector<1x8x1xf32> to vector<8x1xf32>
    %8 = arith.addf %5, %7 : vector<8x1xf32>
    %cst_10 = arith.constant 0.000000e+00 : f32
    %9 = vector.broadcast %cst_10 : f32 to vector<8x1xf32>
    %10 = arith.maximumf %8, %9 : vector<8x1xf32>
    %c0_11 = arith.constant 0 : index
    %c0_12 = arith.constant 0 : index
    %11 = vector.load %arg3[%c0_11, %c0_12] : memref<128x2xf32, #tpu.memory_space<vmem>>, vector<128x2xf32>
    %cst_13 = arith.constant dense<0.000000e+00> : vector<8x2xf32>
    %12 = tpu.matmul %1, %11, %cst_13 {dimension_numbers = #tpu.dot_dimension_numbers<[1], [0], [0], [1], [0, 0, 1, 1], [], []>} : vector<8x128xf32>, vector<128x2xf32>, vector<8x2xf32> -> vector<8x2xf32>
    %c0_14 = arith.constant 0 : index
    %c0_15 = arith.constant 0 : index
    %13 = vector.load %arg6[%c0_14, %c0_15] : memref<8x8xf32, #tpu.memory_space<vmem>>, vector<8x8xf32>
    %cst_16 = arith.constant dense<0.000000e+00> : vector<8x2xf32>
    %14 = tpu.matmul %13, %12, %cst_16 {dimension_numbers = #tpu.dot_dimension_numbers<[1], [0], [0], [1], [0, 0, 1, 1], [], []>} : vector<8x8xf32>, vector<8x2xf32>, vector<8x2xf32> -> vector<8x2xf32>
    %c1 = arith.constant 1 : index
    %c0_17 = arith.constant 0 : index
    %c0_18 = arith.constant 0 : index
    %15 = vector.load %arg8[%c1, %c0_17, %c0_18] : memref<4x8x1xf32, #tpu.memory_space<vmem>>, vector<1x8x1xf32>
    %16 = vector.shape_cast %15 : vector<1x8x1xf32> to vector<8x1xf32>
    %17 = vector.broadcast %16 : vector<8x1xf32> to vector<8x2xf32>
    %18 = arith.addf %14, %17 : vector<8x2xf32>
    %cst_19 = arith.constant 0.000000e+00 : f32
    %19 = vector.broadcast %cst_19 : f32 to vector<8x2xf32>
    %20 = arith.maximumf %18, %19 : vector<8x2xf32>
    %c0_20 = arith.constant 0 : index
    %c0_21 = arith.constant 0 : index
    %21 = vector.load %arg4[%c0_20, %c0_21] : memref<128x4xf32, #tpu.memory_space<vmem>>, vector<128x4xf32>
    %cst_22 = arith.constant dense<0.000000e+00> : vector<8x4xf32>
    %22 = tpu.matmul %1, %21, %cst_22 {dimension_numbers = #tpu.dot_dimension_numbers<[1], [0], [0], [1], [0, 0, 1, 1], [], []>} : vector<8x128xf32>, vector<128x4xf32>, vector<8x4xf32> -> vector<8x4xf32>
    %c0_23 = arith.constant 0 : index
    %c0_24 = arith.constant 0 : index
    %23 = vector.load %arg7[%c0_23, %c0_24] : memref<8x8xf32, #tpu.memory_space<vmem>>, vector<8x8xf32>
    %cst_25 = arith.constant dense<0.000000e+00> : vector<8x4xf32>
    %24 = tpu.matmul %23, %22, %cst_25 {dimension_numbers = #tpu.dot_dimension_numbers<[1], [0], [0], [1], [0, 0, 1, 1], [], []>} : vector<8x8xf32>, vector<8x4xf32>, vector<8x4xf32> -> vector<8x4xf32>
    %c2 = arith.constant 2 : index
    %c0_26 = arith.constant 0 : index
    %c0_27 = arith.constant 0 : index
    %25 = vector.load %arg8[%c2, %c0_26, %c0_27] : memref<4x8x1xf32, #tpu.memory_space<vmem>>, vector<1x8x1xf32>
    %26 = vector.shape_cast %25 : vector<1x8x1xf32> to vector<8x1xf32>
    %27 = vector.broadcast %26 : vector<8x1xf32> to vector<8x4xf32>
    %28 = arith.addf %24, %27 : vector<8x4xf32>
    %cst_28 = arith.constant 0.000000e+00 : f32
    %29 = vector.broadcast %cst_28 : f32 to vector<8x4xf32>
    %30 = arith.maximumf %28, %29 : vector<8x4xf32>
    %31 = tpu.concatenate %10, %20, %30 in 1 : vector<8x1xf32>, vector<8x2xf32>, vector<8x4xf32> -> vector<8x7xf32>
    %c0_29 = arith.constant 0 : index
    %c0_30 = arith.constant 0 : index
    %32 = vector.load %arg9[%c0_29, %c0_30] : memref<7x128xf32, #tpu.memory_space<vmem>>, vector<7x128xf32>
    %cst_31 = arith.constant dense<0.000000e+00> : vector<8x128xf32>
    %33 = tpu.matmul %31, %32, %cst_31 {dimension_numbers = #tpu.dot_dimension_numbers<[1], [0], [0], [1], [0, 0, 1, 1], [], []>} : vector<8x7xf32>, vector<7x128xf32>, vector<8x128xf32> -> vector<8x128xf32>
    %34 = tpu.iota {dimensions = array<i32: 1>} : vector<8x128xi32>
    %c0_i32 = arith.constant 0 : i32
    %35 = vector.broadcast %c0_i32 : i32 to vector<8x128xi32>
    %36 = arith.cmpi eq, %34, %35 : vector<8x128xi32>
    %c1_i32 = arith.constant 1 : i32
    %37 = tpu.dynamic_rotate %33 by %c1_i32 dim 1 : vector<8x128xf32>, i32 -> vector<8x128xf32>
    %cst_32 = arith.constant 0.000000e+00 : f32
    %38 = vector.broadcast %cst_32 : f32 to vector<8x128xf32>
    %39 = arith.select %36, %38, %37 : vector<8x128xi1>, vector<8x128xf32>
    %c15_i32 = arith.constant 15 : i32
    %40 = vector.broadcast %c15_i32 : i32 to vector<8x128xi32>
    %41 = arith.cmpi eq, %34, %40 : vector<8x128xi32>
    %c127_i32 = arith.constant 127 : i32
    %42 = tpu.dynamic_rotate %33 by %c127_i32 dim 1 : vector<8x128xf32>, i32 -> vector<8x128xf32>
    %cst_33 = arith.constant 0.000000e+00 : f32
    %43 = vector.broadcast %cst_33 : f32 to vector<8x128xf32>
    %44 = arith.select %41, %43, %42 : vector<8x128xi1>, vector<8x128xf32>
    %45 = tpu.concatenate %39, %33, %44 in 0 : vector<8x128xf32>, vector<8x128xf32>, vector<8x128xf32> -> vector<24x128xf32>
    %c0_34 = arith.constant 0 : index
    %c0_35 = arith.constant 0 : index
    %46 = vector.load %arg10[%c0_34, %c0_35] : memref<8x24xf32, #tpu.memory_space<vmem>>, vector<8x24xf32>
    %cst_36 = arith.constant dense<0.000000e+00> : vector<8x128xf32>
    %47 = tpu.matmul %46, %45, %cst_36 {dimension_numbers = #tpu.dot_dimension_numbers<[1], [0], [0], [1], [0, 0, 1, 1], [], []>} : vector<8x24xf32>, vector<24x128xf32>, vector<8x128xf32> -> vector<8x128xf32>
    %c3 = arith.constant 3 : index
    %c0_37 = arith.constant 0 : index
    %c0_38 = arith.constant 0 : index
    %48 = vector.load %arg8[%c3, %c0_37, %c0_38] : memref<4x8x1xf32, #tpu.memory_space<vmem>>, vector<1x8x1xf32>
    %49 = vector.shape_cast %48 : vector<1x8x1xf32> to vector<8x1xf32>
    %50 = vector.broadcast %49 : vector<8x1xf32> to vector<8x128xf32>
    %51 = arith.addf %47, %50 : vector<8x128xf32>
    %cst_39 = arith.constant 0.000000e+00 : f32
    %52 = vector.broadcast %cst_39 : f32 to vector<8x128xf32>
    %53 = arith.maximumf %51, %52 : vector<8x128xf32>
    %c0_40 = arith.constant 0 : index
    %c0_41 = arith.constant 0 : index
    %c0_42 = arith.constant 0 : index
    %54 = vector.load %arg11[%c0_40, %c0_41, %c0_42] : memref<1x8x128xf32, #tpu.memory_space<vmem>>, vector<1x8x128xf32>
    %55 = vector.shape_cast %54 : vector<1x8x128xf32> to vector<8x128xf32>
    %56 = vector.shape_cast %53 : vector<8x128xf32> to vector<1x8x128xf32>
    tpu.vector_store %arg11[%c0_40, %c0_41, %c0_42], %56 {strides = array<i32>} : memref<1x8x128xf32, #tpu.memory_space<vmem>>, vector<1x8x128xf32>,
    return
  }
  func.func @transform_0(%arg0: i32) -> (i32, i32, i32) {
    %c0_i32 = arith.constant 0 : i32
    %c0_i32_0 = arith.constant 0 : i32
    %c0_i32_1 = arith.constant 0 : i32
    return %arg0, %c0_i32, %c0_i32_0 : i32, i32, i32
  }
  func.func @transform_1(%arg0: i32) -> (i32, i32) {
    %c0_i32 = arith.constant 0 : i32
    %c0_i32_0 = arith.constant 0 : i32
    %c0_i32_1 = arith.constant 0 : i32
    return %c0_i32, %c0_i32_0 : i32, i32
  }
  func.func @transform_2(%arg0: i32) -> (i32, i32) {
    %c0_i32 = arith.constant 0 : i32
    %c0_i32_0 = arith.constant 0 : i32
    %c0_i32_1 = arith.constant 0 : i32
    return %c0_i32, %c0_i32_0 : i32, i32
  }
  func.func @transform_3(%arg0: i32) -> (i32, i32) {
    %c0_i32 = arith.constant 0 : i32
    %c0_i32_0 = arith.constant 0 : i32
    %c0_i32_1 = arith.constant 0 : i32
    return %c0_i32, %c0_i32_0 : i32, i32
  }
  func.func @transform_4(%arg0: i32) -> (i32, i32) {
    %c0_i32 = arith.constant 0 : i32
    %c0_i32_0 = arith.constant 0 : i32
    %c0_i32_1 = arith.constant 0 : i32
    return %c0_i32, %c0_i32_0 : i32, i32
  }
  func.func @transform_5(%arg0: i32) -> (i32, i32) {
    %c0_i32 = arith.constant 0 : i32
    %c0_i32_0 = arith.constant 0 : i32
    %c0_i32_1 = arith.constant 0 : i32
    return %c0_i32, %c0_i32_0 : i32, i32
  }
  func.func @transform_6(%arg0: i32) -> (i32, i32) {
    %c0_i32 = arith.constant 0 : i32
    %c0_i32_0 = arith.constant 0 : i32
    %c0_i32_1 = arith.constant 0 : i32
    return %c0_i32, %c0_i32_0 : i32, i32
  }
  func.func @transform_7(%arg0: i32) -> (i32, i32, i32) {
    %c0_i32 = arith.constant 0 : i32
    %c0_i32_0 = arith.constant 0 : i32
    %c0_i32_1 = arith.constant 0 : i32
    %c0_i32_2 = arith.constant 0 : i32
    return %c0_i32, %c0_i32_0, %c0_i32_1 : i32, i32, i32
  }
  func.func @transform_8(%arg0: i32) -> (i32, i32) {
    %c0_i32 = arith.constant 0 : i32
    %c0_i32_0 = arith.constant 0 : i32
    %c0_i32_1 = arith.constant 0 : i32
    return %c0_i32, %c0_i32_0 : i32, i32
  }
  func.func @transform_9(%arg0: i32) -> (i32, i32) {
    %c0_i32 = arith.constant 0 : i32
    %c0_i32_0 = arith.constant 0 : i32
    %c0_i32_1 = arith.constant 0 : i32
    return %c0_i32, %c0_i32_0 : i32, i32
  }
  func.func @transform_10(%arg0: i32) -> (i32, i32, i32) {
    %c0_i32 = arith.constant 0 : i32
    %c0_i32_0 = arith.constant 0 : i32
    %c0_i32_1 = arith.constant 0 : i32
    return %arg0, %c0_i32, %c0_i32_0 : i32, i32, i32
  }
}

</mosaic_0001>

<llo_original>
// kernel: tpu_custom_call.1
$region0: #{tpu_custom_call.1}
  #allocation0 [shape = 'u32[]', space=smem, size = 0x4, offset = 0x4, fixed_abs, tag = 'smem constant byte address 0x4 - core index']
  #allocation1 [shape = 'u32[144,128]{1,0:T(1,128)}', space=vmem, size = 0x12000, scoped, tag = 'internal scratch']
  %s0 = inlined_call_operand.vmem [shape: f32[2,8,128], index: 0, kind: input, shape index: {}]
  %s1 = inlined_call_operand.vmem [shape: f32[128,1], index: 1, kind: input, shape index: {}]
  %s2 = inlined_call_operand.vmem [shape: f32[128,2], index: 2, kind: input, shape index: {}]
  %s3 = inlined_call_operand.vmem [shape: f32[128,4], index: 3, kind: input, shape index: {}]
  %s4 = inlined_call_operand.vmem [shape: f32[8,8], index: 4, kind: input, shape index: {}]
  %s5 = inlined_call_operand.vmem [shape: f32[8,8], index: 5, kind: input, shape index: {}]
  %s6 = inlined_call_operand.vmem [shape: f32[8,8], index: 6, kind: input, shape index: {}]
  %s7 = inlined_call_operand.vmem [shape: f32[4,8,1], index: 7, kind: input, shape index: {}]
  %s8 = inlined_call_operand.vmem [shape: f32[7,128], index: 8, kind: input, shape index: {}]
  %s9 = inlined_call_operand.vmem [shape: f32[8,24], index: 9, kind: input, shape index: {}]
  %s10 = inlined_call_operand.hbm [shape: f32[2,8,128], index: 10, kind: output, shape index: {}]
  %s11 = sld [smem:[#allocation0]]
  $region73: #{tpu_custom_call.1} parent=0
    _
  %s13 = ssub.s32 1, %s11
  %s14 = scalar_select 0, %s13, %s11
  $region1: #{tpu_custom_call.1} parent=0
    #allocation2 [shape = 'u8[8192]{0}', space=vmem, size = 0x2000, scoped, tag = 'output window, operand 0']
    #allocation3 [shape = 's32[2]{0}', space=sflag, size = 0x8, scoped, tag = 'scoped memory for tpu_custom_call.1']
    %15 = vsyncpa [#allocation3], 0
    %s16 = scalar_lea.sflag [#allocation3], 1
    %17 = vsyncpa %s16, 0
    loop: start=0, step=1, limit=4
    $region2: #{tpu_custom_call.1} parent=1 // loop_pre_header
      _
    $region3: #{tpu_custom_call.1} parent=1 // loop_header
      %s19 = sphi 0, %s23
      %p20 = scmp.ge.s32.totalorder %s19, 4
      %s29 = sphi 0, %s31
      %s32 = sphi 0, %s29
      %s33 = sphi 0, %s32
      %s49 = sphi 0, %s33
      %s53 = sphi 0, %s53
      %s55 = sphi 0, %s53
      %s56 = sphi 0, %s55
      %s70 = sphi 0, %s56
      %s74 = sphi 0, %s74
      %s76 = sphi 0, %s74
      %s77 = sphi 0, %s76
      %s91 = sphi 0, %s77
      %s95 = sphi 0, %s95
      %s97 = sphi 0, %s95
      %s98 = sphi 0, %s97
      %s112 = sphi 0, %s98
      %s116 = sphi 0, %s116
      %s118 = sphi 0, %s116
      %s119 = sphi 0, %s118
      %s133 = sphi 0, %s119
      %s137 = sphi 0, %s137
      %s139 = sphi 0, %s137
      %s140 = sphi 0, %s139
      %s154 = sphi 0, %s140
      %s158 = sphi 0, %s158
      %s160 = sphi 0, %s158
      %s161 = sphi 0, %s160
      %s175 = sphi 0, %s161
      %s179 = sphi 0, %s179
      %s181 = sphi 0, %s179
      %s182 = sphi 0, %s181
      %s196 = sphi 0, %s182
      %s200 = sphi 0, %s200
      %s202 = sphi 0, %s200
      %s203 = sphi 0, %s202
      %s217 = sphi 0, %s203
      %s221 = sphi 0, %s221
      %s223 = sphi 0, %s221
      %s224 = sphi 0, %s223
      %s238 = sphi 0, %s224
      %s244 = sphi 0, %s246
      %s247 = sphi 0, %s244
      %s248 = sphi 0, %s247
      %s264 = sphi 0, %s248
    $region4: #{tpu_custom_call.1} parent=1 // loop_header_branch
      %22 = sbr.rel (%p20) target = $region8
    $region5: #{tpu_custom_call.1} parent=1 // loop_body
      %s24 = ssub.s32 %s19, 1
      %s25 = ssub.s32 %s19, 2
      %s26 = sadd.s32 %s19, 1
      %s27 = ssub.s32 %s19, %s26
      %p28 = scmp.eq.s32.totalorder %s27, 0
      %s30 = sadd.s32 %s29, 1
      %s31 = scalar_select %p28, %s29, %s30
      %p34 = pneg %p28
      %p35 = scmp.eq.s32.totalorder %s19, 1
      %p36 = por %p34, %p35
      %p37 = scmp.ne.s32.totalorder %s29, %s32
      %p38 = scmp.eq.s32.totalorder %s19, 0
      %p39 = por %p37, %p38
      %p40 = scmp.ne.s32.totalorder %s29, %s32
      %p41 = scmp.eq.s32.totalorder %s24, 1
      %p42 = por %p40, %p41
      %p43 = scmp.ne.s32.totalorder %s32, %s33
      %p44 = scmp.eq.s32.totalorder %s24, 0
      %p45 = por %p43, %p44
      %p46 = scmp.ne.s32.totalorder %s32, %s33
      %p47 = scmp.eq.s32.totalorder %s25, 1
      %p48 = por %p46, %p47
      %p50 = scmp.ne.s32.totalorder %s33, %s49
      %p51 = scmp.eq.s32.totalorder %s25, 0
      %p52 = por %p50, %p51
      %s54 = sadd.s32 %s53, 1
      %p57 = scmp.eq.s32.totalorder %s19, 1
      %p58 = scmp.ne.s32.totalorder %s53, %s55
      %p59 = scmp.eq.s32.totalorder %s19, 0
      %p60 = por %p58, %p59
      %p61 = scmp.ne.s32.totalorder %s53, %s55
      %p62 = scmp.eq.s32.totalorder %s24, 1
      %p63 = por %p61, %p62
      %p64 = scmp.ne.s32.totalorder %s55, %s56
      %p65 = scmp.eq.s32.totalorder %s24, 0
      %p66 = por %p64, %p65
      %p67 = scmp.ne.s32.totalorder %s55, %s56
      %p68 = scmp.eq.s32.totalorder %s25, 1
      %p69 = por %p67, %p68
      %p71 = scmp.ne.s32.totalorder %s56, %s70
      %p72 = scmp.eq.s32.totalorder %s25, 0
      %p73 = por %p71, %p72
      %s75 = sadd.s32 %s74, 1
      %p78 = scmp.eq.s32.totalorder %s19, 1
      %p79 = scmp.ne.s32.totalorder %s74, %s76
      %p80 = scmp.eq.s32.totalorder %s19, 0
      %p81 = por %p79, %p80
      %p82 = scmp.ne.s32.totalorder %s74, %s76
      %p83 = scmp.eq.s32.totalorder %s24, 1
      %p84 = por %p82, %p83
      %p85 = scmp.ne.s32.totalorder %s76, %s77
      %p86 = scmp.eq.s32.totalorder %s24, 0
      %p87 = por %p85, %p86
      %p88 = scmp.ne.s32.totalorder %s76, %s77
      %p89 = scmp.eq.s32.totalorder %s25, 1
      %p90 = por %p88, %p89
      %p92 = scmp.ne.s32.totalorder %s77, %s91
      %p93 = scmp.eq.s32.totalorder %s25, 0
      %p94 = por %p92, %p93
      %s96 = sadd.s32 %s95, 1
      %p99 = scmp.eq.s32.totalorder %s19, 1
      %p100 = scmp.ne.s32.totalorder %s95, %s97
      %p101 = scmp.eq.s32.totalorder %s19, 0
      %p102 = por %p100, %p101
      %p103 = scmp.ne.s32.totalorder %s95, %s97
      %p104 = scmp.eq.s32.totalorder %s24, 1
      %p105 = por %p103, %p104
      %p106 = scmp.ne.s32.totalorder %s97, %s98
      %p107 = scmp.eq.s32.totalorder %s24, 0
      %p108 = por %p106, %p107
      %p109 = scmp.ne.s32.totalorder %s97, %s98
      %p110 = scmp.eq.s32.totalorder %s25, 1
      %p111 = por %p109, %p110
      %p113 = scmp.ne.s32.totalorder %s98, %s112
      %p114 = scmp.eq.s32.totalorder %s25, 0
      %p115 = por %p113, %p114
      %s117 = sadd.s32 %s116, 1
      %p120 = scmp.eq.s32.totalorder %s19, 1
      %p121 = scmp.ne.s32.totalorder %s116, %s118
      %p122 = scmp.eq.s32.totalorder %s19, 0
      %p123 = por %p121, %p122
      %p124 = scmp.ne.s32.totalorder %s116, %s118
      %p125 = scmp.eq.s32.totalorder %s24, 1
      %p126 = por %p124, %p125
      %p127 = scmp.ne.s32.totalorder %s118, %s119
      %p128 = scmp.eq.s32.totalorder %s24, 0
      %p129 = por %p127, %p128
      %p130 = scmp.ne.s32.totalorder %s118, %s119
      %p131 = scmp.eq.s32.totalorder %s25, 1
      %p132 = por %p130, %p131
      %p134 = scmp.ne.s32.totalorder %s119, %s133
      %p135 = scmp.eq.s32.totalorder %s25, 0
      %p136 = por %p134, %p135
      %s138 = sadd.s32 %s137, 1
      %p141 = scmp.eq.s32.totalorder %s19, 1
      %p142 = scmp.ne.s32.totalorder %s137, %s139
      %p143 = scmp.eq.s32.totalorder %s19, 0
      %p144 = por %p142, %p143
      %p145 = scmp.ne.s32.totalorder %s137, %s139
      %p146 = scmp.eq.s32.totalorder %s24, 1
      %p147 = por %p145, %p146
      %p148 = scmp.ne.s32.totalorder %s139, %s140
      %p149 = scmp.eq.s32.totalorder %s24, 0
      %p150 = por %p148, %p149
      %p151 = scmp.ne.s32.totalorder %s139, %s140
      %p152 = scmp.eq.s32.totalorder %s25, 1
      %p153 = por %p151, %p152
      %p155 = scmp.ne.s32.totalorder %s140, %s154
      %p156 = scmp.eq.s32.totalorder %s25, 0
      %p157 = por %p155, %p156
      %s159 = sadd.s32 %s158, 1
      %p162 = scmp.eq.s32.totalorder %s19, 1
      %p163 = scmp.ne.s32.totalorder %s158, %s160
      %p164 = scmp.eq.s32.totalorder %s19, 0
      %p165 = por %p163, %p164
      %p166 = scmp.ne.s32.totalorder %s158, %s160
      %p167 = scmp.eq.s32.totalorder %s24, 1
      %p168 = por %p166, %p167
      %p169 = scmp.ne.s32.totalorder %s160, %s161
      %p170 = scmp.eq.s32.totalorder %s24, 0
      %p171 = por %p169, %p170
      %p172 = scmp.ne.s32.totalorder %s160, %s161
      %p173 = scmp.eq.s32.totalorder %s25, 1
      %p174 = por %p172, %p173
      %p176 = scmp.ne.s32.totalorder %s161, %s175
      %p177 = scmp.eq.s32.totalorder %s25, 0
      %p178 = por %p176, %p177
      %s180 = sadd.s32 %s179, 1
      %p183 = scmp.eq.s32.totalorder %s19, 1
      %p184 = scmp.ne.s32.totalorder %s179, %s181
      %p185 = scmp.eq.s32.totalorder %s19, 0
      %p186 = por %p184, %p185
      %p187 = scmp.ne.s32.totalorder %s179, %s181
      %p188 = scmp.eq.s32.totalorder %s24, 1
      %p189 = por %p187, %p188
      %p190 = scmp.ne.s32.totalorder %s181, %s182
      %p191 = scmp.eq.s32.totalorder %s24, 0
      %p192 = por %p190, %p191
      %p193 = scmp.ne.s32.totalorder %s181, %s182
      %p194 = scmp.eq.s32.totalorder %s25, 1
      %p195 = por %p193, %p194
      %p197 = scmp.ne.s32.totalorder %s182, %s196
      %p198 = scmp.eq.s32.totalorder %s25, 0
      %p199 = por %p197, %p198
      %s201 = sadd.s32 %s200, 1
      %p204 = scmp.eq.s32.totalorder %s19, 1
      %p205 = scmp.ne.s32.totalorder %s200, %s202
      %p206 = scmp.eq.s32.totalorder %s19, 0
      %p207 = por %p205, %p206
      %p208 = scmp.ne.s32.totalorder %s200, %s202
      %p209 = scmp.eq.s32.totalorder %s24, 1
      %p210 = por %p208, %p209
      %p211 = scmp.ne.s32.totalorder %s202, %s203
      %p212 = scmp.eq.s32.totalorder %s24, 0
      %p213 = por %p211, %p212
      %p214 = scmp.ne.s32.totalorder %s202, %s203
      %p215 = scmp.eq.s32.totalorder %s25, 1
      %p216 = por %p214, %p215
      %p218 = scmp.ne.s32.totalorder %s203, %s217
      %p219 = scmp.eq.s32.totalorder %s25, 0
      %p220 = por %p218, %p219
      %s222 = sadd.s32 %s221, 1
      %p225 = scmp.eq.s32.totalorder %s19, 1
      %p226 = scmp.ne.s32.totalorder %s221, %s223
      %p227 = scmp.eq.s32.totalorder %s19, 0
      %p228 = por %p226, %p227
      %p229 = scmp.ne.s32.totalorder %s221, %s223
      %p230 = scmp.eq.s32.totalorder %s24, 1
      %p231 = por %p229, %p230
      %p232 = scmp.ne.s32.totalorder %s223, %s224
      %p233 = scmp.eq.s32.totalorder %s24, 0
      %p234 = por %p232, %p233
      %p235 = scmp.ne.s32.totalorder %s223, %s224
      %p236 = scmp.eq.s32.totalorder %s25, 1
      %p237 = por %p235, %p236
      %p239 = scmp.ne.s32.totalorder %s224, %s238
      %p240 = scmp.eq.s32.totalorder %s25, 0
      %p241 = por %p239, %p240
      %s242 = ssub.s32 %s19, %s26
      %p243 = scmp.eq.s32.totalorder %s242, 0
      %s245 = sadd.s32 %s244, 1
      %s246 = scalar_select %p243, %s244, %s245
      %p249 = pneg %p243
      %p250 = scmp.eq.s32.totalorder %s19, 1
      %p251 = por %p249, %p250
      %p252 = scmp.ne.s32.totalorder %s244, %s247
      %p253 = scmp.eq.s32.totalorder %s19, 0
      %p254 = por %p252, %p253
      %p255 = scmp.ne.s32.totalorder %s244, %s247
      %p256 = scmp.eq.s32.totalorder %s24, 1
      %p257 = por %p255, %p256
      %p258 = scmp.ne.s32.totalorder %s247, %s248
      %p259 = scmp.eq.s32.totalorder %s24, 0
      %p260 = por %p258, %p259
      %p261 = scmp.ne.s32.totalorder %s247, %s248
      %p262 = scmp.eq.s32.totalorder %s25, 1
      %p263 = por %p261, %p262
      %p265 = scmp.ne.s32.totalorder %s248, %s264
      %p266 = scmp.eq.s32.totalorder %s25, 0
      %p267 = por %p265, %p266
      %p268 = scmp.le.s32.totalorder 1, %s19
      %p269 = scmp.lt.s32.totalorder %s19, 3
      %p270 = pnand %p268, %p269
      %p271 = pneg %p270
      // Predicated region
      $region9: #{tpu_custom_call.1} parent=5 // pred_check
        _
      $region10: #{tpu_custom_call.1} parent=5 // pred_check_branch
        %273 = sbr.rel (%p270) target = $region12
      $region11: #{tpu_custom_call.1} parent=5 // pred_region
        %s274 = ssub.s32 %s19, 1
        // Predicated region
        $region13: #{tpu_custom_call.1} parent=11 // pred_check
          %p275 = pneg %p66
        $region14: #{tpu_custom_call.1} parent=11 // pred_check_branch
          %277 = sbr.rel (%p275) target = $region16
        $region15: #{tpu_custom_call.1} parent=11 // pred_region
          _
        $region16: #{tpu_custom_call.1} parent=11 // pred_fallthru
          _
        // Predicated region
        $region17: #{tpu_custom_call.1} parent=11 // pred_check
          %p278 = pneg %p87
        $region18: #{tpu_custom_call.1} parent=11 // pred_check_branch
          %280 = sbr.rel (%p278) target = $region20
        $region19: #{tpu_custom_call.1} parent=11 // pred_region
          _
        $region20: #{tpu_custom_call.1} parent=11 // pred_fallthru
          _
        // Predicated region
        $region21: #{tpu_custom_call.1} parent=11 // pred_check
          %p281 = pneg %p108
        $region22: #{tpu_custom_call.1} parent=11 // pred_check_branch
          %283 = sbr.rel (%p281) target = $region24
        $region23: #{tpu_custom_call.1} parent=11 // pred_region
          _
        $region24: #{tpu_custom_call.1} parent=11 // pred_fallthru
          _
        // Predicated region
        $region25: #{tpu_custom_call.1} parent=11 // pred_check
          %p284 = pneg %p129
        $region26: #{tpu_custom_call.1} parent=11 // pred_check_branch
          %286 = sbr.rel (%p284) target = $region28
        $region27: #{tpu_custom_call.1} parent=11 // pred_region
          _
        $region28: #{tpu_custom_call.1} parent=11 // pred_fallthru
          _
        // Predicated region
        $region29: #{tpu_custom_call.1} parent=11 // pred_check
          %p287 = pneg %p150
        $region30: #{tpu_custom_call.1} parent=11 // pred_check_branch
          %289 = sbr.rel (%p287) target = $region32
        $region31: #{tpu_custom_call.1} parent=11 // pred_region
          _
        $region32: #{tpu_custom_call.1} parent=11 // pred_fallthru
          _
        // Predicated region
        $region33: #{tpu_custom_call.1} parent=11 // pred_check
          %p290 = pneg %p171
        $region34: #{tpu_custom_call.1} parent=11 // pred_check_branch
          %292 = sbr.rel (%p290) target = $region36
        $region35: #{tpu_custom_call.1} parent=11 // pred_region
          _
        $region36: #{tpu_custom_call.1} parent=11 // pred_fallthru
          _
        // Predicated region
        $region37: #{tpu_custom_call.1} parent=11 // pred_check
          %p293 = pneg %p192
        $region38: #{tpu_custom_call.1} parent=11 // pred_check_branch
          %295 = sbr.rel (%p293) target = $region40
        $region39: #{tpu_custom_call.1} parent=11 // pred_region
          _
        $region40: #{tpu_custom_call.1} parent=11 // pred_fallthru
          _
        // Predicated region
        $region41: #{tpu_custom_call.1} parent=11 // pred_check
          %p296 = pneg %p213
        $region42: #{tpu_custom_call.1} parent=11 // pred_check_branch
          %298 = sbr.rel (%p296) target = $region44
        $region43: #{tpu_custom_call.1} parent=11 // pred_region
          _
        $region44: #{tpu_custom_call.1} parent=11 // pred_fallthru
          _
        // Predicated region
        $region45: #{tpu_custom_call.1} parent=11 // pred_check
          %p299 = pneg %p234
        $region46: #{tpu_custom_call.1} parent=11 // pred_check_branch
          %301 = sbr.rel (%p299) target = $region48
        $region47: #{tpu_custom_call.1} parent=11 // pred_region
          _
        $region48: #{tpu_custom_call.1} parent=11 // pred_fallthru
          _
      $region12: #{tpu_custom_call.1} parent=5 // pred_fallthru
        _
      %p302 = scmp.lt.s32.totalorder %s19, 2
      // Predicated region
      $region49: #{tpu_custom_call.1} parent=5 // pred_check
        %p303 = pneg %p302
      $region50: #{tpu_custom_call.1} parent=5 // pred_check_branch
        %305 = sbr.rel (%p303) target = $region52
      $region51: #{tpu_custom_call.1} parent=5 // pred_region
        // Predicated region
        $region53: #{tpu_custom_call.1} parent=51 // pred_check
          %p306 = pneg %p39
        $region54: #{tpu_custom_call.1} parent=51 // pred_check_branch
          %308 = sbr.rel (%p306) target = $region56
        $region55: #{tpu_custom_call.1} parent=51 // pred_region
          %p309 = scmp.lt.s32.totalorder %s19, 1
          %s310 = scalar_select %p309, %s19, 1
          %s311 = smul.addr %s310, 8
          %s312 = scalar_lea.vmem %s0, %s311
        $region56: #{tpu_custom_call.1} parent=51 // pred_fallthru
          _
      $region52: #{tpu_custom_call.1} parent=5 // pred_fallthru
        _
      %p313 = scmp.le.s32.totalorder 1, %s19
      %p314 = scmp.lt.s32.totalorder %s19, 3
      %p315 = pnand %p313, %p314
      %p316 = pneg %p315
      // Predicated region
      $region57: #{tpu_custom_call.1} parent=5 // pred_check
        _
      $region58: #{tpu_custom_call.1} parent=5 // pred_check_branch
        %318 = sbr.rel (%p315) target = $region60
      $region59: #{tpu_custom_call.1} parent=5 // pred_region
        %s319 = ssub.s32 %s19, 1
        %p320 = scmp.lt.s32.totalorder %s24, 1
        %s321 = scalar_select %p320, %s24, 1
        %s322 = smul.addr %s321, 8
        %s323 = scalar_lea.vmem %s0, %s322
        %p324 = pneg %p45
        %p325 = pneg %p42
        %p326 = pneg %p66
        %p327 = pneg %p63
        %p328 = pneg %p87
        %p329 = pneg %p84
        %p330 = pneg %p108
        %p331 = pneg %p105
        %p332 = pneg %p129
        %p333 = pneg %p126
        %p334 = pneg %p150
        %p335 = pneg %p147
        %p336 = pneg %p171
        %p337 = pneg %p168
        %p338 = pneg %p192
        %p339 = pneg %p189
        %p340 = pneg %p213
        %p341 = pneg %p210
        %p342 = pneg %p234
        %p343 = pneg %p231
        %p344 = pneg %p260
        %p345 = pneg %p257
        %s346 = sand.u32 %s247, 1
        %s347 = scalar_lea.sflag [#allocation3], %s346
        %s348 = sand.u32 %s247, 1
        %s349 = smul.addr %s348, 8
        %s350 = scalar_lea.vmem [#allocation2], %s349
        %p351 = scmp.lt.s32.totalorder %s24, 1
        %s352 = scalar_select %p351, %s24, 1
        %s353 = smul.addr %s352, 8
        %s354 = scalar_lea.vmem %s0, %s353
        %v355 = vld [vmem:[%s354] sm:$0xff]
        %v356 = vld [vmem:[%s1] sm:$0xff]
        %v357 = vld [vmem:[%s1 + $0x8] sm:$0xff]
        %v358 = vld [vmem:[%s1 + $0x10] sm:$0xff]
        %v359 = vld [vmem:[%s1 + $0x18] sm:$0xff]
        %v360 = vld [vmem:[%s1 + $0x20] sm:$0xff]
        %v361 = vld [vmem:[%s1 + $0x28] sm:$0xff]
        %v362 = vld [vmem:[%s1 + $0x30] sm:$0xff]
        %v363 = vld [vmem:[%s1 + $0x38] sm:$0xff]
        %v364 = vld [vmem:[%s1 + $0x40] sm:$0xff]
        %v365 = vld [vmem:[%s1 + $0x48] sm:$0xff]
        %v366 = vld [vmem:[%s1 + $0x50] sm:$0xff]
        %v367 = vld [vmem:[%s1 + $0x58] sm:$0xff]
        %v368 = vld [vmem:[%s1 + $0x60] sm:$0xff]
        %v369 = vld [vmem:[%s1 + $0x68] sm:$0xff]
        %v370 = vld [vmem:[%s1 + $0x70] sm:$0xff]
        %v371 = vld [vmem:[%s1 + $0x78] sm:$0xff]
        %372 = vmatprep.subr.mxu0 0.0
        %373 = vmatpush1.msra.mxu0 %v371
        %374 = vmatprep.subr.mxu0 0.0
        %375 = vmatpush1.msra.mxu0 %v370
        %376 = vmatprep.subr.mxu0 0.0
        %377 = vmatpush1.msra.mxu0 %v369
        %378 = vmatprep.subr.mxu0 0.0
        %379 = vmatpush1.msra.mxu0 %v368
        %380 = vmatprep.subr.mxu0 0.0
        %381 = vmatpush1.msra.mxu0 %v367
        %382 = vmatprep.subr.mxu0 0.0
        %383 = vmatpush1.msra.mxu0 %v366
        %384 = vmatprep.subr.mxu0 0.0
        %385 = vmatpush1.msra.mxu0 %v365
        %386 = vmatprep.subr.mxu0 0.0
        %387 = vmatpush1.msra.mxu0 %v364
        %388 = vmatprep.subr.mxu0 0.0
        %389 = vmatpush1.msra.mxu0 %v363
        %390 = vmatprep.subr.mxu0 0.0
        %391 = vmatpush1.msra.mxu0 %v362
        %392 = vmatprep.subr.mxu0 0.0
        %393 = vmatpush1.msra.mxu0 %v361
        %394 = vmatprep.subr.mxu0 0.0
        %395 = vmatpush1.msra.mxu0 %v360
        %396 = vmatprep.subr.mxu0 0.0
        %397 = vmatpush1.msra.mxu0 %v359
        %398 = vmatprep.subr.mxu0 0.0
        %399 = vmatpush1.msra.mxu0 %v358
        %400 = vmatprep.subr.mxu0 0.0
        %401 = vmatpush1.msra.mxu0 %v357
        %402 = vmatprep.subr.mxu0 0.0
        %403 = vmatpush1.msra.mxu0 %v356
        %404 = vmatprep.subr.mxu0 0.0
        %405 = vmatpush2.msra.mxu0 0.0
        %406 = vmatprep.subr.mxu0 0.0
        %407 = vmatpush2.msra.mxu0 0.0
        %408 = vmatprep.subr.mxu0 0.0
        %409 = vmatpush2.msra.mxu0 0.0
        %410 = vmatprep.subr.mxu0 0.0
        %411 = vmatpush2.msra.mxu0 0.0
        %412 = vmatprep.subr.mxu0 0.0
        %413 = vmatpush2.msra.mxu0 0.0
        %414 = vmatprep.subr.mxu0 0.0
        %415 = vmatpush2.msra.mxu0 0.0
        %416 = vmatprep.subr.mxu0 0.0
        %417 = vmatpush2.msra.mxu0 0.0
        %418 = vmatprep.subr.mxu0 0.0
        %419 = vmatpush2.msra.mxu0 0.0
        %420 = vmatprep.subr.mxu0 0.0
        %421 = vmatpush2.msra.mxu0 0.0
        %422 = vmatprep.subr.mxu0 0.0
        %423 = vmatpush2.msra.mxu0 0.0
        %424 = vmatprep.subr.mxu0 0.0
        %425 = vmatpush2.msra.mxu0 0.0
        %426 = vmatprep.subr.mxu0 0.0
        %427 = vmatpush2.msra.mxu0 0.0
        %428 = vmatprep.subr.mxu0 0.0
        %429 = vmatpush2.msra.mxu0 0.0
        %430 = vmatprep.subr.mxu0 0.0
        %431 = vmatpush2.msra.mxu0 0.0
        %432 = vmatprep.subr.mxu0 0.0
        %433 = vmatpush2.msra.mxu0 0.0
        %434 = vmatprep.subr.mxu0 0.0
        %435 = vmatpush2.msra.mxu0 0.0
        %436 = vmatprep.mubr.f32.mxu0 0.0
        %437 = vmatmul.mubr.f32.gmra.mxu0 %v355
        %v438 = vpop.f32.mrf.mxu0
        %v439 = vadd.f32 0.0, %v438
        %v440 = vpop.f32.mrf.mxu0
        %441 = vdwg.mxu0
        %v442 = vld [vmem:[%s4] sm:$0xff]
        %v443 = vld [vmem:[%s7] sm:$0xff]
        %vm444 = vcmask 64512
        %v446 = vsel %vm444, %v442, 0
        %448 = vmatprep.subr.mxu0 0.0
        %449 = vmatpush1.msra.mxu0 0.0
        %450 = vmatprep.subr.mxu0 0.0
        %451 = vmatpush1.msra.mxu0 0.0
        %452 = vmatprep.subr.mxu0 0.0
        %453 = vmatpush1.msra.mxu0 0.0
        %454 = vmatprep.subr.mxu0 0.0
        %455 = vmatpush1.msra.mxu0 0.0
        %456 = vmatprep.subr.mxu0 0.0
        %457 = vmatpush1.msra.mxu0 0.0
        %458 = vmatprep.subr.mxu0 0.0
        %459 = vmatpush1.msra.mxu0 0.0
        %460 = vmatprep.subr.mxu0 0.0
        %461 = vmatpush1.msra.mxu0 0.0
        %462 = vmatprep.subr.mxu0 0.0
        %463 = vmatpush1.msra.mxu0 0.0
        %464 = vmatprep.subr.mxu0 0.0
        %465 = vmatpush1.msra.mxu0 0.0
        %466 = vmatprep.subr.mxu0 0.0
        %467 = vmatpush1.msra.mxu0 0.0
        %468 = vmatprep.subr.mxu0 0.0
        %469 = vmatpush1.msra.mxu0 0.0
        %470 = vmatprep.subr.mxu0 0.0
        %471 = vmatpush1.msra.mxu0 0.0
        %472 = vmatprep.subr.mxu0 0.0
        %473 = vmatpush1.msra.mxu0 0.0
        %474 = vmatprep.subr.mxu0 0.0
        %475 = vmatpush1.msra.mxu0 0.0
        %476 = vmatprep.subr.mxu0 0.0
        %477 = vmatpush1.msra.mxu0 0.0
        %478 = vmatprep.subr.mxu0 0.0
        %479 = vmatpush1.msra.mxu0 %v439
        %480 = vmatprep.subr.mxu0 0.0
        %481 = vmatpush2.msra.mxu0 0.0
        %482 = vmatprep.subr.mxu0 0.0
        %483 = vmatpush2.msra.mxu0 0.0
        %484 = vmatprep.subr.mxu0 0.0
        %485 = vmatpush2.msra.mxu0 0.0
        %486 = vmatprep.subr.mxu0 0.0
        %487 = vmatpush2.msra.mxu0 0.0
        %488 = vmatprep.subr.mxu0 0.0
        %489 = vmatpush2.msra.mxu0 0.0
        %490 = vmatprep.subr.mxu0 0.0
        %491 = vmatpush2.msra.mxu0 0.0
        %492 = vmatprep.subr.mxu0 0.0
        %493 = vmatpush2.msra.mxu0 0.0
        %494 = vmatprep.subr.mxu0 0.0
        %495 = vmatpush2.msra.mxu0 0.0
        %496 = vmatprep.subr.mxu0 0.0
        %497 = vmatpush2.msra.mxu0 0.0
        %498 = vmatprep.subr.mxu0 0.0
        %499 = vmatpush2.msra.mxu0 0.0
        %500 = vmatprep.subr.mxu0 0.0
        %501 = vmatpush2.msra.mxu0 0.0
        %502 = vmatprep.subr.mxu0 0.0
        %503 = vmatpush2.msra.mxu0 0.0
        %504 = vmatprep.subr.mxu0 0.0
        %505 = vmatpush2.msra.mxu0 0.0
        %506 = vmatprep.subr.mxu0 0.0
        %507 = vmatpush2.msra.mxu0 0.0
        %508 = vmatprep.subr.mxu0 0.0
        %509 = vmatpush2.msra.mxu0 0.0
        %510 = vmatprep.subr.mxu0 0.0
        %511 = vmatpush2.msra.mxu0 0.0
        %512 = vmatprep.mubr.f32.mxu0 0.0
        %513 = vmatmul.mubr.f32.gmra.mxu0 %v446
        %v514 = vpop.f32.mrf.mxu0
        %v515 = vadd.f32 %v443, %v514
        %v516 = vpop.f32.mrf.mxu0
        %517 = vdwg.mxu0
        %v518 = vmax.f32 %v515, 0.0
        %v519 = vld [vmem:[%s2] sm:$0xff]
        %v520 = vld [vmem:[%s2 + $0x8] sm:$0xff]
        %v521 = vld [vmem:[%s2 + $0x10] sm:$0xff]
        %v522 = vld [vmem:[%s2 + $0x18] sm:$0xff]
        %v523 = vld [vmem:[%s2 + $0x20] sm:$0xff]
        %v524 = vld [vmem:[%s2 + $0x28] sm:$0xff]
        %v525 = vld [vmem:[%s2 + $0x30] sm:$0xff]
        %v526 = vld [vmem:[%s2 + $0x38] sm:$0xff]
        %v527 = vld [vmem:[%s2 + $0x40] sm:$0xff]
        %v528 = vld [vmem:[%s2 + $0x48] sm:$0xff]
        %v529 = vld [vmem:[%s2 + $0x50] sm:$0xff]
        %v530 = vld [vmem:[%s2 + $0x58] sm:$0xff]
        %v531 = vld [vmem:[%s2 + $0x60] sm:$0xff]
        %v532 = vld [vmem:[%s2 + $0x68] sm:$0xff]
        %v533 = vld [vmem:[%s2 + $0x70] sm:$0xff]
        %v534 = vld [vmem:[%s2 + $0x78] sm:$0xff]
        %535 = vmatprep.subr.mxu0 0.0
        %536 = vmatpush1.msra.mxu0 %v534
        %537 = vmatprep.subr.mxu0 0.0
        %538 = vmatpush1.msra.mxu0 %v533
        %539 = vmatprep.subr.mxu0 0.0
        %540 = vmatpush1.msra.mxu0 %v532
        %541 = vmatprep.subr.mxu0 0.0
        %542 = vmatpush1.msra.mxu0 %v531
        %543 = vmatprep.subr.mxu0 0.0
        %544 = vmatpush1.msra.mxu0 %v530
        %545 = vmatprep.subr.mxu0 0.0
        %546 = vmatpush1.msra.mxu0 %v529
        %547 = vmatprep.subr.mxu0 0.0
        %548 = vmatpush1.msra.mxu0 %v528
        %549 = vmatprep.subr.mxu0 0.0
        %550 = vmatpush1.msra.mxu0 %v527
        %551 = vmatprep.subr.mxu0 0.0
        %552 = vmatpush1.msra.mxu0 %v526
        %553 = vmatprep.subr.mxu0 0.0
        %554 = vmatpush1.msra.mxu0 %v525
        %555 = vmatprep.subr.mxu0 0.0
        %556 = vmatpush1.msra.mxu0 %v524
        %557 = vmatprep.subr.mxu0 0.0
        %558 = vmatpush1.msra.mxu0 %v523
        %559 = vmatprep.subr.mxu0 0.0
        %560 = vmatpush1.msra.mxu0 %v522
        %561 = vmatprep.subr.mxu0 0.0
        %562 = vmatpush1.msra.mxu0 %v521
        %563 = vmatprep.subr.mxu0 0.0
        %564 = vmatpush1.msra.mxu0 %v520
        %565 = vmatprep.subr.mxu0 0.0
        %566 = vmatpush1.msra.mxu0 %v519
        %567 = vmatprep.subr.mxu0 0.0
        %568 = vmatpush2.msra.mxu0 0.0
        %569 = vmatprep.subr.mxu0 0.0
        %570 = vmatpush2.msra.mxu0 0.0
        %571 = vmatprep.subr.mxu0 0.0
        %572 = vmatpush2.msra.mxu0 0.0
        %573 = vmatprep.subr.mxu0 0.0
        %574 = vmatpush2.msra.mxu0 0.0
        %575 = vmatprep.subr.mxu0 0.0
        %576 = vmatpush2.msra.mxu0 0.0
        %577 = vmatprep.subr.mxu0 0.0
        %578 = vmatpush2.msra.mxu0 0.0
        %579 = vmatprep.subr.mxu0 0.0
        %580 = vmatpush2.msra.mxu0 0.0
        %581 = vmatprep.subr.mxu0 0.0
        %582 = vmatpush2.msra.mxu0 0.0
        %583 = vmatprep.subr.mxu0 0.0
        %584 = vmatpush2.msra.mxu0 0.0
        %585 = vmatprep.subr.mxu0 0.0
        %586 = vmatpush2.msra.mxu0 0.0
        %587 = vmatprep.subr.mxu0 0.0
        %588 = vmatpush2.msra.mxu0 0.0
        %589 = vmatprep.subr.mxu0 0.0
        %590 = vmatpush2.msra.mxu0 0.0
        %591 = vmatprep.subr.mxu0 0.0
        %592 = vmatpush2.msra.mxu0 0.0
        %593 = vmatprep.subr.mxu0 0.0
        %594 = vmatpush2.msra.mxu0 0.0
        %595 = vmatprep.subr.mxu0 0.0
        %596 = vmatpush2.msra.mxu0 0.0
        %597 = vmatprep.subr.mxu0 0.0
        %598 = vmatpush2.msra.mxu0 0.0
        %599 = vmatprep.mubr.f32.mxu0 0.0
        %600 = vmatmul.mubr.f32.gmra.mxu0 %v355
        %v601 = vpop.f32.mrf.mxu0
        %v602 = vadd.f32 0.0, %v601
        %v603 = vpop.f32.mrf.mxu0
        %604 = vdwg.mxu0
        %v605 = vld [vmem:[%s5] sm:$0xff]
        %s606 = scalar_lea.vmem %s7, 8
        %v607 = vld [vmem:[%s606] sm:$0xff]
        %609 = vset.pattern.permute.xlu0 0
        %610 = vperm.xlu0 %609, %v607
        %v611 = vpop.permute.xlu0 %610
        %v614 = vsel %vm444, %v605, 0
        %616 = vmatprep.subr.mxu0 0.0
        %617 = vmatpush1.msra.mxu0 0.0
        %618 = vmatprep.subr.mxu0 0.0
        %619 = vmatpush1.msra.mxu0 0.0
        %620 = vmatprep.subr.mxu0 0.0
        %621 = vmatpush1.msra.mxu0 0.0
        %622 = vmatprep.subr.mxu0 0.0
        %623 = vmatpush1.msra.mxu0 0.0
        %624 = vmatprep.subr.mxu0 0.0
        %625 = vmatpush1.msra.mxu0 0.0
        %626 = vmatprep.subr.mxu0 0.0
        %627 = vmatpush1.msra.mxu0 0.0
        %628 = vmatprep.subr.mxu0 0.0
        %629 = vmatpush1.msra.mxu0 0.0
        %630 = vmatprep.subr.mxu0 0.0
        %631 = vmatpush1.msra.mxu0 0.0
        %632 = vmatprep.subr.mxu0 0.0
        %633 = vmatpush1.msra.mxu0 0.0
        %634 = vmatprep.subr.mxu0 0.0
        %635 = vmatpush1.msra.mxu0 0.0
        %636 = vmatprep.subr.mxu0 0.0
        %637 = vmatpush1.msra.mxu0 0.0
        %638 = vmatprep.subr.mxu0 0.0
        %639 = vmatpush1.msra.mxu0 0.0
        %640 = vmatprep.subr.mxu0 0.0
        %641 = vmatpush1.msra.mxu0 0.0
        %642 = vmatprep.subr.mxu0 0.0
        %643 = vmatpush1.msra.mxu0 0.0
        %644 = vmatprep.subr.mxu0 0.0
        %645 = vmatpush1.msra.mxu0 0.0
        %646 = vmatprep.subr.mxu0 0.0
        %647 = vmatpush1.msra.mxu0 %v602
        %648 = vmatprep.subr.mxu0 0.0
        %649 = vmatpush2.msra.mxu0 0.0
        %650 = vmatprep.subr.mxu0 0.0
        %651 = vmatpush2.msra.mxu0 0.0
        %652 = vmatprep.subr.mxu0 0.0
        %653 = vmatpush2.msra.mxu0 0.0
        %654 = vmatprep.subr.mxu0 0.0
        %655 = vmatpush2.msra.mxu0 0.0
        %656 = vmatprep.subr.mxu0 0.0
        %657 = vmatpush2.msra.mxu0 0.0
        %658 = vmatprep.subr.mxu0 0.0
        %659 = vmatpush2.msra.mxu0 0.0
        %660 = vmatprep.subr.mxu0 0.0
        %661 = vmatpush2.msra.mxu0 0.0
        %662 = vmatprep.subr.mxu0 0.0
        %663 = vmatpush2.msra.mxu0 0.0
        %664 = vmatprep.subr.mxu0 0.0
        %665 = vmatpush2.msra.mxu0 0.0
        %666 = vmatprep.subr.mxu0 0.0
        %667 = vmatpush2.msra.mxu0 0.0
        %668 = vmatprep.subr.mxu0 0.0
        %669 = vmatpush2.msra.mxu0 0.0
        %670 = vmatprep.subr.mxu0 0.0
        %671 = vmatpush2.msra.mxu0 0.0
        %672 = vmatprep.subr.mxu0 0.0
        %673 = vmatpush2.msra.mxu0 0.0
        %674 = vmatprep.subr.mxu0 0.0
        %675 = vmatpush2.msra.mxu0 0.0
        %676 = vmatprep.subr.mxu0 0.0
        %677 = vmatpush2.msra.mxu0 0.0
        %678 = vmatprep.subr.mxu0 0.0
        %679 = vmatpush2.msra.mxu0 0.0
        %680 = vmatprep.mubr.f32.mxu0 0.0
        %681 = vmatmul.mubr.f32.gmra.mxu0 %v614
        %v682 = vpop.f32.mrf.mxu0
        %v683 = vadd.f32 %v611, %v682
        %v684 = vpop.f32.mrf.mxu0
        %685 = vdwg.mxu0
        %v686 = vmax.f32 %v683, 0.0
        %v687 = vld [vmem:[%s3] sm:$0xff]
        %v688 = vld [vmem:[%s3 + $0x8] sm:$0xff]
        %v689 = vld [vmem:[%s3 + $0x10] sm:$0xff]
        %v690 = vld [vmem:[%s3 + $0x18] sm:$0xff]
        %v691 = vld [vmem:[%s3 + $0x20] sm:$0xff]
        %v692 = vld [vmem:[%s3 + $0x28] sm:$0xff]
        %v693 = vld [vmem:[%s3 + $0x30] sm:$0xff]
        %v694 = vld [vmem:[%s3 + $0x38] sm:$0xff]
        %v695 = vld [vmem:[%s3 + $0x40] sm:$0xff]
        %v696 = vld [vmem:[%s3 + $0x48] sm:$0xff]
        %v697 = vld [vmem:[%s3 + $0x50] sm:$0xff]
        %v698 = vld [vmem:[%s3 + $0x58] sm:$0xff]
        %v699 = vld [vmem:[%s3 + $0x60] sm:$0xff]
        %v700 = vld [vmem:[%s3 + $0x68] sm:$0xff]
        %v701 = vld [vmem:[%s3 + $0x70] sm:$0xff]
        %v702 = vld [vmem:[%s3 + $0x78] sm:$0xff]
        %703 = vmatprep.subr.mxu0 0.0
        %704 = vmatpush1.msra.mxu0 %v702
        %705 = vmatprep.subr.mxu0 0.0
        %706 = vmatpush1.msra.mxu0 %v701
        %707 = vmatprep.subr.mxu0 0.0
        %708 = vmatpush1.msra.mxu0 %v700
        %709 = vmatprep.subr.mxu0 0.0
        %710 = vmatpush1.msra.mxu0 %v699
        %711 = vmatprep.subr.mxu0 0.0
        %712 = vmatpush1.msra.mxu0 %v698
        %713 = vmatprep.subr.mxu0 0.0
        %714 = vmatpush1.msra.mxu0 %v697
        %715 = vmatprep.subr.mxu0 0.0
        %716 = vmatpush1.msra.mxu0 %v696
        %717 = vmatprep.subr.mxu0 0.0
        %718 = vmatpush1.msra.mxu0 %v695
        %719 = vmatprep.subr.mxu0 0.0
        %720 = vmatpush1.msra.mxu0 %v694
        %721 = vmatprep.subr.mxu0 0.0
        %722 = vmatpush1.msra.mxu0 %v693
        %723 = vmatprep.subr.mxu0 0.0
        %724 = vmatpush1.msra.mxu0 %v692
        %725 = vmatprep.subr.mxu0 0.0
        %726 = vmatpush1.msra.mxu0 %v691
        %727 = vmatprep.subr.mxu0 0.0
        %728 = vmatpush1.msra.mxu0 %v690
        %729 = vmatprep.subr.mxu0 0.0
        %730 = vmatpush1.msra.mxu0 %v689
        %731 = vmatprep.subr.mxu0 0.0
        %732 = vmatpush1.msra.mxu0 %v688
        %733 = vmatprep.subr.mxu0 0.0
        %734 = vmatpush1.msra.mxu0 %v687
        %735 = vmatprep.subr.mxu0 0.0
        %736 = vmatpush2.msra.mxu0 0.0
        %737 = vmatprep.subr.mxu0 0.0
        %738 = vmatpush2.msra.mxu0 0.0
        %739 = vmatprep.subr.mxu0 0.0
        %740 = vmatpush2.msra.mxu0 0.0
        %741 = vmatprep.subr.mxu0 0.0
        %742 = vmatpush2.msra.mxu0 0.0
        %743 = vmatprep.subr.mxu0 0.0
        %744 = vmatpush2.msra.mxu0 0.0
        %745 = vmatprep.subr.mxu0 0.0
        %746 = vmatpush2.msra.mxu0 0.0
        %747 = vmatprep.subr.mxu0 0.0
        %748 = vmatpush2.msra.mxu0 0.0
        %749 = vmatprep.subr.mxu0 0.0
        %750 = vmatpush2.msra.mxu0 0.0
        %751 = vmatprep.subr.mxu0 0.0
        %752 = vmatpush2.msra.mxu0 0.0
        %753 = vmatprep.subr.mxu0 0.0
        %754 = vmatpush2.msra.mxu0 0.0
        %755 = vmatprep.subr.mxu0 0.0
        %756 = vmatpush2.msra.mxu0 0.0
        %757 = vmatprep.subr.mxu0 0.0
        %758 = vmatpush2.msra.mxu0 0.0
        %759 = vmatprep.subr.mxu0 0.0
        %760 = vmatpush2.msra.mxu0 0.0
        %761 = vmatprep.subr.mxu0 0.0
        %762 = vmatpush2.msra.mxu0 0.0
        %763 = vmatprep.subr.mxu0 0.0
        %764 = vmatpush2.msra.mxu0 0.0
        %765 = vmatprep.subr.mxu0 0.0
        %766 = vmatpush2.msra.mxu0 0.0
        %767 = vmatprep.mubr.f32.mxu0 0.0
        %768 = vmatmul.mubr.f32.gmra.mxu0 %v355
        %v769 = vpop.f32.mrf.mxu0
        %v770 = vadd.f32 0.0, %v769
        %v771 = vpop.f32.mrf.mxu0
        %772 = vdwg.mxu0
        %v773 = vld [vmem:[%s6] sm:$0xff]
        %s774 = scalar_lea.vmem %s7, 16
        %v775 = vld [vmem:[%s774] sm:$0xff]
        %777 = vset.pattern.permute.xlu0 0
        %778 = vperm.xlu0 %777, %v775
        %v779 = vpop.permute.xlu0 %778
        %v782 = vsel %vm444, %v773, 0
        %784 = vmatprep.subr.mxu0 0.0
        %785 = vmatpush1.msra.mxu0 0.0
        %786 = vmatprep.subr.mxu0 0.0
        %787 = vmatpush1.msra.mxu0 0.0
        %788 = vmatprep.subr.mxu0 0.0
        %789 = vmatpush1.msra.mxu0 0.0
        %790 = vmatprep.subr.mxu0 0.0
        %791 = vmatpush1.msra.mxu0 0.0
        %792 = vmatprep.subr.mxu0 0.0
        %793 = vmatpush1.msra.mxu0 0.0
        %794 = vmatprep.subr.mxu0 0.0
        %795 = vmatpush1.msra.mxu0 0.0
        %796 = vmatprep.subr.mxu0 0.0
        %797 = vmatpush1.msra.mxu0 0.0
        %798 = vmatprep.subr.mxu0 0.0
        %799 = vmatpush1.msra.mxu0 0.0
        %800 = vmatprep.subr.mxu0 0.0
        %801 = vmatpush1.msra.mxu0 0.0
        %802 = vmatprep.subr.mxu0 0.0
        %803 = vmatpush1.msra.mxu0 0.0
        %804 = vmatprep.subr.mxu0 0.0
        %805 = vmatpush1.msra.mxu0 0.0
        %806 = vmatprep.subr.mxu0 0.0
        %807 = vmatpush1.msra.mxu0 0.0
        %808 = vmatprep.subr.mxu0 0.0
        %809 = vmatpush1.msra.mxu0 0.0
        %810 = vmatprep.subr.mxu0 0.0
        %811 = vmatpush1.msra.mxu0 0.0
        %812 = vmatprep.subr.mxu0 0.0
        %813 = vmatpush1.msra.mxu0 0.0
        %814 = vmatprep.subr.mxu0 0.0
        %815 = vmatpush1.msra.mxu0 %v770
        %816 = vmatprep.subr.mxu0 0.0
        %817 = vmatpush2.msra.mxu0 0.0
        %818 = vmatprep.subr.mxu0 0.0
        %819 = vmatpush2.msra.mxu0 0.0
        %820 = vmatprep.subr.mxu0 0.0
        %821 = vmatpush2.msra.mxu0 0.0
        %822 = vmatprep.subr.mxu0 0.0
        %823 = vmatpush2.msra.mxu0 0.0
        %824 = vmatprep.subr.mxu0 0.0
        %825 = vmatpush2.msra.mxu0 0.0
        %826 = vmatprep.subr.mxu0 0.0
        %827 = vmatpush2.msra.mxu0 0.0
        %828 = vmatprep.subr.mxu0 0.0
        %829 = vmatpush2.msra.mxu0 0.0
        %830 = vmatprep.subr.mxu0 0.0
        %831 = vmatpush2.msra.mxu0 0.0
        %832 = vmatprep.subr.mxu0 0.0
        %833 = vmatpush2.msra.mxu0 0.0
        %834 = vmatprep.subr.mxu0 0.0
        %835 = vmatpush2.msra.mxu0 0.0
        %836 = vmatprep.subr.mxu0 0.0
        %837 = vmatpush2.msra.mxu0 0.0
        %838 = vmatprep.subr.mxu0 0.0
        %839 = vmatpush2.msra.mxu0 0.0
        %840 = vmatprep.subr.mxu0 0.0
        %841 = vmatpush2.msra.mxu0 0.0
        %842 = vmatprep.subr.mxu0 0.0
        %843 = vmatpush2.msra.mxu0 0.0
        %844 = vmatprep.subr.mxu0 0.0
        %845 = vmatpush2.msra.mxu0 0.0
        %846 = vmatprep.subr.mxu0 0.0
        %847 = vmatpush2.msra.mxu0 0.0
        %848 = vmatprep.mubr.f32.mxu0 0.0
        %849 = vmatmul.mubr.f32.gmra.mxu0 %v782
        %v850 = vpop.f32.mrf.mxu0
        %v851 = vadd.f32 %v779, %v850
        %v852 = vpop.f32.mrf.mxu0
        %853 = vdwg.mxu0
        %v854 = vmax.f32 %v851, 0.0
        %856 = vrot.lane.b32.xlu0 %v686, 1
        %v857 = vpop.permute.xlu0 %856
        %860 = vrot.lane.b32.xlu0 %v854, 3
        %v861 = vpop.permute.xlu0 %860
        %vm863 = vcmask 7168
        %v864 = vsel %vm863, %v518, %v857
        %vm865 = vcmask 23552
        %v866 = vsel %vm865, %v864, %v861
        %v867 = vld [vmem:[%s8] sm:$0x7f]
        %vm868 = vcmask 56320
        %v870 = vsel %vm868, %v866, 0
        %vm872 = vcmask 1046528
        %v874 = vsel %vm872, %v867, 0
        %876 = vmatprep.subr.mxu0 0.0
        %877 = vmatpush1.msra.mxu0 0.0
        %878 = vmatprep.subr.mxu0 0.0
        %879 = vmatpush1.msra.mxu0 0.0
        %880 = vmatprep.subr.mxu0 0.0
        %881 = vmatpush1.msra.mxu0 0.0
        %882 = vmatprep.subr.mxu0 0.0
        %883 = vmatpush1.msra.mxu0 0.0
        %884 = vmatprep.subr.mxu0 0.0
        %885 = vmatpush1.msra.mxu0 0.0
        %886 = vmatprep.subr.mxu0 0.0
        %887 = vmatpush1.msra.mxu0 0.0
        %888 = vmatprep.subr.mxu0 0.0
        %889 = vmatpush1.msra.mxu0 0.0
        %890 = vmatprep.subr.mxu0 0.0
        %891 = vmatpush1.msra.mxu0 0.0
        %892 = vmatprep.subr.mxu0 0.0
        %893 = vmatpush1.msra.mxu0 0.0
        %894 = vmatprep.subr.mxu0 0.0
        %895 = vmatpush1.msra.mxu0 0.0
        %896 = vmatprep.subr.mxu0 0.0
        %897 = vmatpush1.msra.mxu0 0.0
        %898 = vmatprep.subr.mxu0 0.0
        %899 = vmatpush1.msra.mxu0 0.0
        %900 = vmatprep.subr.mxu0 0.0
        %901 = vmatpush1.msra.mxu0 0.0
        %902 = vmatprep.subr.mxu0 0.0
        %903 = vmatpush1.msra.mxu0 0.0
        %904 = vmatprep.subr.mxu0 0.0
        %905 = vmatpush1.msra.mxu0 0.0
        %906 = vmatprep.subr.mxu0 0.0
        %907 = vmatpush1.msra.mxu0 %v874
        %908 = vmatprep.subr.mxu0 0.0
        %909 = vmatpush2.msra.mxu0 0.0
        %910 = vmatprep.subr.mxu0 0.0
        %911 = vmatpush2.msra.mxu0 0.0
        %912 = vmatprep.subr.mxu0 0.0
        %913 = vmatpush2.msra.mxu0 0.0
        %914 = vmatprep.subr.mxu0 0.0
        %915 = vmatpush2.msra.mxu0 0.0
        %916 = vmatprep.subr.mxu0 0.0
        %917 = vmatpush2.msra.mxu0 0.0
        %918 = vmatprep.subr.mxu0 0.0
        %919 = vmatpush2.msra.mxu0 0.0
        %920 = vmatprep.subr.mxu0 0.0
        %921 = vmatpush2.msra.mxu0 0.0
        %922 = vmatprep.subr.mxu0 0.0
        %923 = vmatpush2.msra.mxu0 0.0
        %924 = vmatprep.subr.mxu0 0.0
        %925 = vmatpush2.msra.mxu0 0.0
        %926 = vmatprep.subr.mxu0 0.0
        %927 = vmatpush2.msra.mxu0 0.0
        %928 = vmatprep.subr.mxu0 0.0
        %929 = vmatpush2.msra.mxu0 0.0
        %930 = vmatprep.subr.mxu0 0.0
        %931 = vmatpush2.msra.mxu0 0.0
        %932 = vmatprep.subr.mxu0 0.0
        %933 = vmatpush2.msra.mxu0 0.0
        %934 = vmatprep.subr.mxu0 0.0
        %935 = vmatpush2.msra.mxu0 0.0
        %936 = vmatprep.subr.mxu0 0.0
        %937 = vmatpush2.msra.mxu0 0.0
        %938 = vmatprep.subr.mxu0 0.0
        %939 = vmatpush2.msra.mxu0 0.0
        %940 = vmatprep.mubr.f32.mxu0 0.0
        %941 = vmatmul.mubr.f32.gmra.mxu0 %v870
        %v942 = vpop.f32.mrf.mxu0
        %v943 = vadd.f32 0.0, %v942
        %v944 = vpop.f32.mrf.mxu0
        %945 = vdwg.mxu0
        %v946 = vlaneseq
        %v947 = vand.u32 %v946, 127
        %vm948 = vcmp.eq.s32.totalorder %v947, 0
        %949 = vrot.lane.b32.xlu0 %v943, 1
        %v950 = vpop.permute.xlu0 %949
        %v951 = vsel %vm948, 0.0, %v950
        %vm952 = vcmp.eq.s32.totalorder %v947, 15
        %953 = vrot.lane.b32.xlu0 %v943, 127
        %v954 = vpop.permute.xlu0 %953
        %v955 = vsel %vm952, 0.0, %v954
        %v956 = vld [vmem:[%s9] sm:$0xff]
        %s957 = scalar_lea.vmem %s7, 24
        %v958 = vld [vmem:[%s957] sm:$0xff]
        %960 = vset.pattern.permute.xlu0 0
        %961 = vperm.xlu0 %960, %v958
        %v962 = vpop.permute.xlu0 %961
        %vm964 = vcmask 195584
        %v966 = vsel %vm964, %v956, 0
        %968 = vmatprep.subr.mxu0 0.0
        %969 = vmatpush1.msra.mxu0 0.0
        %970 = vmatprep.subr.mxu0 0.0
        %971 = vmatpush1.msra.mxu0 0.0
        %972 = vmatprep.subr.mxu0 0.0
        %973 = vmatpush1.msra.mxu0 0.0
        %974 = vmatprep.subr.mxu0 0.0
        %975 = vmatpush1.msra.mxu0 0.0
        %976 = vmatprep.subr.mxu0 0.0
        %977 = vmatpush1.msra.mxu0 0.0
        %978 = vmatprep.subr.mxu0 0.0
        %979 = vmatpush1.msra.mxu0 0.0
        %980 = vmatprep.subr.mxu0 0.0
        %981 = vmatpush1.msra.mxu0 0.0
        %982 = vmatprep.subr.mxu0 0.0
        %983 = vmatpush1.msra.mxu0 0.0
        %984 = vmatprep.subr.mxu0 0.0
        %985 = vmatpush1.msra.mxu0 0.0
        %986 = vmatprep.subr.mxu0 0.0
        %987 = vmatpush1.msra.mxu0 0.0
        %988 = vmatprep.subr.mxu0 0.0
        %989 = vmatpush1.msra.mxu0 0.0
        %990 = vmatprep.subr.mxu0 0.0
        %991 = vmatpush1.msra.mxu0 0.0
        %992 = vmatprep.subr.mxu0 0.0
        %993 = vmatpush1.msra.mxu0 0.0
        %994 = vmatprep.subr.mxu0 0.0
        %995 = vmatpush1.msra.mxu0 %v955
        %996 = vmatprep.subr.mxu0 0.0
        %997 = vmatpush1.msra.mxu0 %v943
        %998 = vmatprep.subr.mxu0 0.0
        %999 = vmatpush1.msra.mxu0 %v951
        %1000 = vmatprep.subr.mxu0 0.0
        %1001 = vmatpush2.msra.mxu0 0.0
        %1002 = vmatprep.subr.mxu0 0.0
        %1003 = vmatpush2.msra.mxu0 0.0
        %1004 = vmatprep.subr.mxu0 0.0
        %1005 = vmatpush2.msra.mxu0 0.0
        %1006 = vmatprep.subr.mxu0 0.0
        %1007 = vmatpush2.msra.mxu0 0.0
        %1008 = vmatprep.subr.mxu0 0.0
        %1009 = vmatpush2.msra.mxu0 0.0
        %1010 = vmatprep.subr.mxu0 0.0
        %1011 = vmatpush2.msra.mxu0 0.0
        %1012 = vmatprep.subr.mxu0 0.0
        %1013 = vmatpush2.msra.mxu0 0.0
        %1014 = vmatprep.subr.mxu0 0.0
        %1015 = vmatpush2.msra.mxu0 0.0
        %1016 = vmatprep.subr.mxu0 0.0
        %1017 = vmatpush2.msra.mxu0 0.0
        %1018 = vmatprep.subr.mxu0 0.0
        %1019 = vmatpush2.msra.mxu0 0.0
        %1020 = vmatprep.subr.mxu0 0.0
        %1021 = vmatpush2.msra.mxu0 0.0
        %1022 = vmatprep.subr.mxu0 0.0
        %1023 = vmatpush2.msra.mxu0 0.0
        %1024 = vmatprep.subr.mxu0 0.0
        %1025 = vmatpush2.msra.mxu0 0.0
        %1026 = vmatprep.subr.mxu0 0.0
        %1027 = vmatpush2.msra.mxu0 0.0
        %1028 = vmatprep.subr.mxu0 0.0
        %1029 = vmatpush2.msra.mxu0 0.0
        %1030 = vmatprep.subr.mxu0 0.0
        %1031 = vmatpush2.msra.mxu0 0.0
        %1032 = vmatprep.mubr.f32.mxu0 0.0
        %1033 = vmatmul.mubr.f32.gmra.mxu0 %v966
        %v1034 = vpop.f32.mrf.mxu0
        %v1035 = vadd.f32 %v962, %v1034
        %v1036 = vpop.f32.mrf.mxu0
        %1037 = vdwg.mxu0
        %v1038 = vmax.f32 %v1035, 0.0
        %1039 = vst [vmem:[%s350] sm:$0xff] %v1038
        %s1040 = sand.u32 %s247, 1
        %s1041 = scalar_lea.sflag [#allocation3], %s1040
        %s1042 = sand.u32 %s247, 1
        %s1043 = smul.addr %s1042, 8
        %s1044 = scalar_lea.vmem [#allocation2], %s1043
        // Predicated region
        $region61: #{tpu_custom_call.1} parent=59 // pred_check
          %p1045 = pneg %p257
        $region62: #{tpu_custom_call.1} parent=59 // pred_check_branch
          %1047 = sbr.rel (%p1045) target = $region64
        $region63: #{tpu_custom_call.1} parent=59 // pred_region
          %s1049 = ssub.s32 128, 128
          %1050 = vsyncadd %s1041, %s1049
          %s1051 = smul.addr %s24, 128
          %s1052 = scalar_lea.hbm %s10, %s1051
          %s1054 = sshll.u32 %s1044, 4
          %s1055 = int_to_ptr.vmem [resolvable:$true] %s1054
          %1057 = dma.vmem_to_hbm [thread:$0]  %s1055, 128, %s1052, %s1041
        $region64: #{tpu_custom_call.1} parent=59 // pred_fallthru
          _
      $region60: #{tpu_custom_call.1} parent=5 // pred_fallthru
        _
      %p1058 = scmp.le.s32.totalorder 2, %s19
      // Predicated region
      $region65: #{tpu_custom_call.1} parent=5 // pred_check
        %p1059 = pneg %p1058
      $region66: #{tpu_custom_call.1} parent=5 // pred_check_branch
        %1061 = sbr.rel (%p1059) target = $region68
      $region67: #{tpu_custom_call.1} parent=5 // pred_region
        %s1062 = ssub.s32 %s19, 2
        // Predicated region
        $region69: #{tpu_custom_call.1} parent=67 // pred_check
          %p1063 = pneg %p263
        $region70: #{tpu_custom_call.1} parent=67 // pred_check_branch
          %1065 = sbr.rel (%p1063) target = $region72
        $region71: #{tpu_custom_call.1} parent=67 // pred_region
          %s1066 = sand.u32 %s248, 1
          %s1067 = scalar_lea.sflag [#allocation3], %s1066
          %s1068 = sand.u32 %s248, 1
          %s1069 = smul.addr %s1068, 8
          %s1070 = scalar_lea.vmem [#allocation2], %s1069
          %1071 = dma.done %s1067, 128
        $region72: #{tpu_custom_call.1} parent=67 // pred_fallthru
          _
      $region68: #{tpu_custom_call.1} parent=5 // pred_fallthru
        _
    $region6: #{tpu_custom_call.1} parent=1 // loop_footer
      %s23 = sadd.s32 1, %s19
    $region7: #{tpu_custom_call.1} parent=1 // loop_footer_branch
      %18 = sbr.rel target = $region3
    $region8: #{tpu_custom_call.1} parent=1 // loop_exit
      _
    %1072 = vsyncpa [#allocation3], 1
    %s1073 = scalar_lea.sflag [#allocation3], 1
    %1074 = vsyncpa %s1073, 1

</llo_original>
